<compile_context>
chip_gen: v6e
topology: v6e:2x2x1
jax: 0.10.0
libtpu: 0.0.40
codegen_flags: <defaults>
</compile_context>

<pallas_src>
import functools

import jax
import jax.numpy as jnp
from jax.experimental import pallas as pl
from jax.experimental.pallas import tpu as pltpu


def _round_up(x: int, m: int) -> int:
    return ((x + m - 1) // m) * m


def _pick_tile(dim_padded: int, tile_target: int, align: int) -> int:
    """Largest multiple of `align` that divides dim_padded and is <= tile_target."""
    n_blocks = dim_padded // align
    max_blocks = max(1, min(tile_target // align, n_blocks))
    for d in range(max_blocks, 0, -1):
        if n_blocks % d == 0:
            return d * align
    return align


def _chip_config():
    """Generation-aware tile targets and scoped-VMEM budget."""
    try:
        cap = int(pltpu.get_tpu_info().vmem_capacity_bytes)
    except Exception:
        cap = 64 * 1024 * 1024  # assume the smallest (v7x-like) part if query unavailable
    if cap >= 100 * 1024 * 1024:            # v5e / v6e: 128 MiB physical VMEM
        return {"tn": 1024, "tk": 2048, "vmem_limit": 96 * 1024 * 1024}
    # v7x: 64 MiB physical VMEM — keep double-buffered tiles well under ~48 MiB
    return {"tn": 512, "tk": 1024, "vmem_limit": 48 * 1024 * 1024}


# ----------------------------------- kernels -----------------------------------

def _linear_kernel_f32out(x_ref, w_ref, b_ref, o_ref):
    # f32 output: accumulate directly into the resident output tile (no scratch).
    k = pl.program_id(2)

    @pl.when(k == 0)
    def _():
        o_ref[...] = jnp.zeros_like(o_ref)

    o_ref[...] += jnp.dot(x_ref[...], w_ref[...], preferred_element_type=jnp.float32)

    @pl.when(k == pl.num_programs(2) - 1)
    def _():
        o_ref[...] += b_ref[...]                      # bias epilogue stays f32


def _linear_kernel_acc(x_ref, w_ref, b_ref, o_ref, acc_ref):
    # non-f32 output: f32 VMEM accumulator, single cast + store at the end.
    k = pl.program_id(2)

    @pl.when(k == 0)
    def _():
        acc_ref[...] = jnp.zeros_like(acc_ref)

    acc_ref[...] += jnp.dot(x_ref[...], w_ref[...], preferred_element_type=jnp.float32)

    @pl.when(k == pl.num_programs(2) - 1)
    def _():
        o_ref[...] = (acc_ref[...] + b_ref[...]).astype(o_ref.dtype)


# ------------------------------------ layer ------------------------------------

def make_downstream_layer(weight, bias, *, compute_dtype=None, tm_cap=1024):
    """One-time setup of DownstreamLayer (== nn.Linear(hidden_dim, output_dim)).

    weight: [output_dim, hidden_dim] (PyTorch layout), bias: [output_dim].
    Returns (params, forward) with forward(x, params, stat=...) == x @ weight.T + bias.
    Weight transpose to [H, O] and zero-padding to tile-aligned shapes happen HERE,
    once, not inside the jitted per-call forward.
    """
    O, H = weight.shape
    cfg = _chip_config()

    N_pad = _round_up(O, 128)
    K_pad = _round_up(H, 128)
    tn = _pick_tile(N_pad, cfg["tn"], 128)
    tk = _pick_tile(K_pad, cfg["tk"], 128)
    vmem_limit = cfg["vmem_limit"]

    w_t = weight.T                                    # [H, O] — standard ((1,),(0,)) contraction
    if compute_dtype is not None:
        w_t = w_t.astype(compute_dtype)
    if (K_pad, N_pad) != (H, O):
        w_t = jnp.pad(w_t, ((0, K_pad - H), (0, N_pad - O)))
    b_p = bias.astype(jnp.float32).reshape(1, O)
    if N_pad != O:
        b_p = jnp.pad(b_p, ((0, 0), (0, N_pad - O)))
    params = (w_t, b_p)

    @functools.partial(jax.jit, static_argnames=("stat",))
    def forward(x, params, stat=None):                # `stat` unused, as in the PyTorch module
        del stat
        w_p, bias_p = params
        B, Hx = x.shape
        assert Hx == H, "input feature dim must equal hidden_dim"
        out_dtype = x.dtype

        if compute_dtype is not None:
            x = x.astype(compute_dtype)

        # bf16 packs 16 rows per sublane group; f32 packs 8.
        m_align = 16 if jnp.dtype(x.dtype).itemsize == 2 else 8
        M_pad = _round_up(B, m_align)
        tm = _pick_tile(M_pad, tm_cap, m_align)       # whole batch in one M tile when B <= tm_cap
        if (M_pad, K_pad) != (B, Hx):
            x = jnp.pad(x, ((0, M_pad - B), (0, K_pad - Hx)))

        f32_out = out_dtype == jnp.float32
        kernel = _linear_kernel_f32out if f32_out else _linear_kernel_acc
        scratch = [] if f32_out else [pltpu.VMEM((tm, tn), jnp.float32)]

        out_padded = pl.pallas_call(
            kernel,
            out_shape=jax.ShapeDtypeStruct((M_pad, N_pad), out_dtype),
            grid=(M_pad // tm, N_pad // tn, K_pad // tk),   # reduction axis K last
            in_specs=[
                pl.BlockSpec((tm, tk), lambda i, j, k: (i, k)),   # x        [M, K]
                pl.BlockSpec((tk, tn), lambda i, j, k: (k, j)),   # weight^T [K, N]
                pl.BlockSpec((1, tn), lambda i, j, k: (0, j)),    # bias     [1, N]
            ],
            out_specs=pl.BlockSpec((tm, tn), lambda i, j, k: (i, j)),
            scratch_shapes=scratch,
            compiler_params=pltpu.CompilerParams(
                dimension_semantics=("parallel", "parallel", "arbitrary"),
                vmem_limit_bytes=vmem_limit,
            ),
        )(x, w_p, bias_p)

        if (M_pad, N_pad) == (B, O):
            return out_padded
        return out_padded[:B, :O]

    return params, forward


if __name__ == "__main__":
    # Module hyperparameters (input_dim1/input_dim2 unused in forward).
    input_dim1, input_dim2 = 8, 8
    hidden_dim, output_dim = 32, 16
    batch = 8

    key = jax.random.PRNGKey(0)
    k_x, k_w, k_b = jax.random.split(key, 3)

    # Deterministic init mimicking PyTorch Linear default: U(-1/sqrt(in), 1/sqrt(in)).
    bound = 1.0 / (hidden_dim ** 0.5)
    weight = jax.random.uniform(
        k_w, (output_dim, hidden_dim), jnp.float32, minval=-bound, maxval=bound)
    bias = jax.random.uniform(
        k_b, (output_dim,), jnp.float32, minval=-bound, maxval=bound)
    x = jax.random.normal(k_x, (batch, hidden_dim), jnp.float32)

    # f32 path (compute_dtype=None) -> matches the reference exactly.
    params, forward = make_downstream_layer(weight, bias)
    out = forward(x, params, stat="eval")
    out = jax.block_until_ready(out)

    # Reference check against plain JAX (same math as torch F.linear).
    ref = x @ weight.T + bias
    assert out.shape == (batch, output_dim)
    assert jnp.allclose(out, ref, atol=1e-5, rtol=1e-5)

    print("KERNEL_OK")
</pallas_src>

<mosaic_0001>
module attributes {stable_mosaic.version = 11 : i64} {
  func.func @_linear_kernel_f32out(%arg0: i32, %arg1: i32, %arg2: i32, %arg3: memref<8x128xf32, #tpu.memory_space<vmem>>, %arg4: memref<128x128xf32, #tpu.memory_space<vmem>>, %arg5: memref<1x128xf32, #tpu.memory_space<vmem>>, %arg6: memref<8x128xf32, #tpu.memory_space<vmem>>) attributes {dimension_semantics = [#tpu.dimension_semantics<parallel>, #tpu.dimension_semantics<parallel>, #tpu.dimension_semantics<arbitrary>], iteration_bounds = array<i64: 1, 1, 1>, scalar_prefetch = 0 : i64, scratch_operands = 0 : i64, tpu.core_type = #tpu.core_type<tc>, window_params = [{transform_indices = @transform_0, window_bounds = array<i64: 8, 128>}, {transform_indices = @transform_1, window_bounds = array<i64: 128, 128>}, {transform_indices = @transform_2, window_bounds = array<i64: 1, 128>}, {transform_indices = @transform_3, window_bounds = array<i64: 8, 128>}]} {
    %c0_i32 = arith.constant 0 : i32
    %0 = arith.cmpi eq, %arg2, %c0_i32 : i32
    %1 = arith.extui %0 : i1 to i32
    %c0_i32_0 = arith.constant 0 : i32
    %2 = arith.cmpi ne, %1, %c0_i32_0 : i32
    scf.if %2 {
      %cst_10 = arith.constant 0.000000e+00 : f32
      %12 = vector.broadcast %cst_10 : f32 to vector<8x128xf32>
      %c0_11 = arith.constant 0 : index
      %c0_12 = arith.constant 0 : index
      %13 = vector.load %arg6[%c0_11, %c0_12] : memref<8x128xf32, #tpu.memory_space<vmem>>, vector<8x128xf32>
      tpu.vector_store %arg6[%c0_11, %c0_12], %12 {strides = array<i32>} : memref<8x128xf32, #tpu.memory_space<vmem>>, vector<8x128xf32>,
    } else {
    }
    %c0 = arith.constant 0 : index
    %c0_1 = arith.constant 0 : index
    %3 = vector.load %arg6[%c0, %c0_1] : memref<8x128xf32, #tpu.memory_space<vmem>>, vector<8x128xf32>
    %c0_2 = arith.constant 0 : index
    %c0_3 = arith.constant 0 : index
    %4 = vector.load %arg3[%c0_2, %c0_3] : memref<8x128xf32, #tpu.memory_space<vmem>>, vector<8x128xf32>
    %c0_4 = arith.constant 0 : index
    %c0_5 = arith.constant 0 : index
    %5 = vector.load %arg4[%c0_4, %c0_5] : memref<128x128xf32, #tpu.memory_space<vmem>>, vector<128x128xf32>
    %cst = arith.constant dense<0.000000e+00> : vector<8x128xf32>
    %6 = tpu.matmul %4, %5, %cst {dimension_numbers = #tpu.dot_dimension_numbers<[1], [0], [0], [1], [0, 0, 1, 1], [], []>} : vector<8x128xf32>, vector<128x128xf32>, vector<8x128xf32> -> vector<8x128xf32>
    %7 = arith.addf %3, %6 : vector<8x128xf32>
    %c0_6 = arith.constant 0 : index
    %c0_7 = arith.constant 0 : index
    %8 = vector.load %arg6[%c0_6, %c0_7] : memref<8x128xf32, #tpu.memory_space<vmem>>, vector<8x128xf32>
    tpu.vector_store %arg6[%c0_6, %c0_7], %7 {strides = array<i32>} : memref<8x128xf32, #tpu.memory_space<vmem>>, vector<8x128xf32>,
    %c0_i32_8 = arith.constant 0 : i32
    %9 = arith.cmpi eq, %arg2, %c0_i32_8 : i32
    %10 = arith.extui %9 : i1 to i32
    %c0_i32_9 = arith.constant 0 : i32
    %11 = arith.cmpi ne, %10, %c0_i32_9 : i32
    scf.if %11 {
      %c0_10 = arith.constant 0 : index
      %c0_11 = arith.constant 0 : index
      %12 = vector.load %arg6[%c0_10, %c0_11] : memref<8x128xf32, #tpu.memory_space<vmem>>, vector<8x128xf32>
      %c0_12 = arith.constant 0 : index
      %c0_13 = arith.constant 0 : index
      %13 = vector.load %arg5[%c0_12, %c0_13] : memref<1x128xf32, #tpu.memory_space<vmem>>, vector<1x128xf32>
      %14 = vector.broadcast %13 : vector<1x128xf32> to vector<8x128xf32>
      %15 = arith.addf %12, %14 : vector<8x128xf32>
      %c0_14 = arith.constant 0 : index
      %c0_15 = arith.constant 0 : index
      %16 = vector.load %arg6[%c0_14, %c0_15] : memref<8x128xf32, #tpu.memory_space<vmem>>, vector<8x128xf32>
      tpu.vector_store %arg6[%c0_14, %c0_15], %15 {strides = array<i32>} : memref<8x128xf32, #tpu.memory_space<vmem>>, vector<8x128xf32>,
    } else {
    }
    return
  }
  func.func @transform_0(%arg0: i32, %arg1: i32, %arg2: i32) -> (i32, i32) {
    %c0_i32 = arith.constant 0 : i32
    return %arg0, %arg2 : i32, i32
  }
  func.func @transform_1(%arg0: i32, %arg1: i32, %arg2: i32) -> (i32, i32) {
    %c0_i32 = arith.constant 0 : i32
    return %arg2, %arg1 : i32, i32
  }
  func.func @transform_2(%arg0: i32, %arg1: i32, %arg2: i32) -> (i32, i32) {
    %c0_i32 = arith.constant 0 : i32
    %c0_i32_0 = arith.constant 0 : i32
    return %c0_i32, %arg1 : i32, i32
  }
  func.func @transform_3(%arg0: i32, %arg1: i32, %arg2: i32) -> (i32, i32) {
    %c0_i32 = arith.constant 0 : i32
    return %arg0, %arg1 : i32, i32
  }
}

</mosaic_0001>

<llo_original>
// kernel: forward.1
$region0: #{forward.1}
  #allocation0 [shape = 'u32[]', space=smem, size = 0x4, offset = 0x4, fixed_abs, tag = 'smem constant byte address 0x4 - core index']
  #allocation1 [shape = 'u32[144,128]{1,0:T(1,128)}', space=vmem, size = 0x12000, scoped, tag = 'internal scratch']
  %s0 = inlined_call_operand.vmem [shape: f32[8,128], index: 0, kind: input, shape index: {}]
  %s1 = inlined_call_operand.hbm [shape: f32[128,128], index: 1, kind: input, shape index: {}]
  %s2 = inlined_call_operand.vmem [shape: f32[1,128], index: 2, kind: input, shape index: {}]
  %s3 = inlined_call_operand.hbm [shape: f32[8,128], index: 3, kind: output, shape index: {}]
  %s4 = sld [smem:[#allocation0]]
  $region34: #{forward.1} parent=0
    _
  %s6 = ssub.s32 1, %s4
  %s7 = scalar_select 0, %s6, %s4
  $region1: #{forward.1} parent=0
    #allocation2 [shape = 'u8[65536]{0}', space=vmem, size = 0x10000, scoped, tag = 'input window, operand 1, single buffered']
    #allocation3 [shape = 's32[1]{0}', space=sflag, size = 0x4, scoped, tag = 'scoped memory for forward.1']
    #allocation4 [shape = 's32[1]{0}', space=sflag, size = 0x4, scoped, tag = 'scoped memory for forward.1']
    #allocation5 [shape = 'u8[4096]{0}', space=vmem, size = 0x1000, scoped, tag = 'output window, operand 0, single buffered']
    %8 = vsyncpa [#allocation3], 0
    %9 = vsyncpa [#allocation4], 0
    // Predicated region
    $region2: #{forward.1} parent=1 // pred_check
      _
    $region3: #{forward.1} parent=1 // pred_check_branch
      %11 = sbr.rel (0) target = $region5
    $region4: #{forward.1} parent=1 // pred_region
      _
    $region5: #{forward.1} parent=1 // pred_fallthru
      _
    // Predicated region
    $region6: #{forward.1} parent=1 // pred_check
      _
    $region7: #{forward.1} parent=1 // pred_check_branch
      %13 = sbr.rel (0) target = $region9
    $region8: #{forward.1} parent=1 // pred_region
      %s15 = ssub.s32 2048, 2048
      %16 = vsyncadd [#allocation3], %s15
      %s17 = sshll.u32 [#allocation2], 4
      %s18 = int_to_ptr.vmem [resolvable:$true] %s17
      %23 = dma.hbm_to_vmem [thread:$0]  %s1, 2048, %s18, [#allocation3], 128, 128, 8
    $region9: #{forward.1} parent=1 // pred_fallthru
      _
    // Predicated region
    $region10: #{forward.1} parent=1 // pred_check
      _
    $region11: #{forward.1} parent=1 // pred_check_branch
      %25 = sbr.rel (0) target = $region13
    $region12: #{forward.1} parent=1 // pred_region
      _
    $region13: #{forward.1} parent=1 // pred_fallthru
      _
    // Predicated region
    $region14: #{forward.1} parent=1 // pred_check
      _
    $region15: #{forward.1} parent=1 // pred_check_branch
      %27 = sbr.rel (0) target = $region17
    $region16: #{forward.1} parent=1 // pred_region
      %28 = dma.done [#allocation3], 2048
    $region17: #{forward.1} parent=1 // pred_fallthru
      _
    %p29 = scmp.eq.s32.totalorder 0, 0
    // Predicated region
    $region18: #{forward.1} parent=1 // pred_check
      %p30 = pneg %p29
    $region19: #{forward.1} parent=1 // pred_check_branch
      %32 = sbr.rel (%p30) target = $region21
    $region20: #{forward.1} parent=1 // pred_region
      %33 = vst [vmem:[#allocation5] sm:$0xff] 0.0
    $region21: #{forward.1} parent=1 // pred_fallthru
      _
    %v34 = vld [vmem:[#allocation5] sm:$0xff]
    %v35 = vld [vmem:[%s0] sm:$0xff]
    %v36 = vld [vmem:[#allocation2] sm:$0xff]
    %v37 = vld [vmem:[#allocation2 + $0x8] sm:$0xff]
    %v38 = vld [vmem:[#allocation2 + $0x10] sm:$0xff]
    %v39 = vld [vmem:[#allocation2 + $0x18] sm:$0xff]
    %v40 = vld [vmem:[#allocation2 + $0x20] sm:$0xff]
    %v41 = vld [vmem:[#allocation2 + $0x28] sm:$0xff]
    %v42 = vld [vmem:[#allocation2 + $0x30] sm:$0xff]
    %v43 = vld [vmem:[#allocation2 + $0x38] sm:$0xff]
    %v44 = vld [vmem:[#allocation2 + $0x40] sm:$0xff]
    %v45 = vld [vmem:[#allocation2 + $0x48] sm:$0xff]
    %v46 = vld [vmem:[#allocation2 + $0x50] sm:$0xff]
    %v47 = vld [vmem:[#allocation2 + $0x58] sm:$0xff]
    %v48 = vld [vmem:[#allocation2 + $0x60] sm:$0xff]
    %v49 = vld [vmem:[#allocation2 + $0x68] sm:$0xff]
    %v50 = vld [vmem:[#allocation2 + $0x70] sm:$0xff]
    %v51 = vld [vmem:[#allocation2 + $0x78] sm:$0xff]
    %52 = vmatprep.subr.mxu0 0.0
    %53 = vmatpush1.msra.mxu0 %v51
    %54 = vmatprep.subr.mxu0 0.0
    %55 = vmatpush1.msra.mxu0 %v50
    %56 = vmatprep.subr.mxu0 0.0
    %57 = vmatpush1.msra.mxu0 %v49
    %58 = vmatprep.subr.mxu0 0.0
    %59 = vmatpush1.msra.mxu0 %v48
    %60 = vmatprep.subr.mxu0 0.0
    %61 = vmatpush1.msra.mxu0 %v47
    %62 = vmatprep.subr.mxu0 0.0
    %63 = vmatpush1.msra.mxu0 %v46
    %64 = vmatprep.subr.mxu0 0.0
    %65 = vmatpush1.msra.mxu0 %v45
    %66 = vmatprep.subr.mxu0 0.0
    %67 = vmatpush1.msra.mxu0 %v44
    %68 = vmatprep.subr.mxu0 0.0
    %69 = vmatpush1.msra.mxu0 %v43
    %70 = vmatprep.subr.mxu0 0.0
    %71 = vmatpush1.msra.mxu0 %v42
    %72 = vmatprep.subr.mxu0 0.0
    %73 = vmatpush1.msra.mxu0 %v41
    %74 = vmatprep.subr.mxu0 0.0
    %75 = vmatpush1.msra.mxu0 %v40
    %76 = vmatprep.subr.mxu0 0.0
    %77 = vmatpush1.msra.mxu0 %v39
    %78 = vmatprep.subr.mxu0 0.0
    %79 = vmatpush1.msra.mxu0 %v38
    %80 = vmatprep.subr.mxu0 0.0
    %81 = vmatpush1.msra.mxu0 %v37
    %82 = vmatprep.subr.mxu0 0.0
    %83 = vmatpush1.msra.mxu0 %v36
    %84 = vmatprep.subr.mxu0 0.0
    %85 = vmatpush2.msra.mxu0 0.0
    %86 = vmatprep.subr.mxu0 0.0
    %87 = vmatpush2.msra.mxu0 0.0
    %88 = vmatprep.subr.mxu0 0.0
    %89 = vmatpush2.msra.mxu0 0.0
    %90 = vmatprep.subr.mxu0 0.0
    %91 = vmatpush2.msra.mxu0 0.0
    %92 = vmatprep.subr.mxu0 0.0
    %93 = vmatpush2.msra.mxu0 0.0
    %94 = vmatprep.subr.mxu0 0.0
    %95 = vmatpush2.msra.mxu0 0.0
    %96 = vmatprep.subr.mxu0 0.0
    %97 = vmatpush2.msra.mxu0 0.0
    %98 = vmatprep.subr.mxu0 0.0
    %99 = vmatpush2.msra.mxu0 0.0
    %100 = vmatprep.subr.mxu0 0.0
    %101 = vmatpush2.msra.mxu0 0.0
    %102 = vmatprep.subr.mxu0 0.0
    %103 = vmatpush2.msra.mxu0 0.0
    %104 = vmatprep.subr.mxu0 0.0
    %105 = vmatpush2.msra.mxu0 0.0
    %106 = vmatprep.subr.mxu0 0.0
    %107 = vmatpush2.msra.mxu0 0.0
    %108 = vmatprep.subr.mxu0 0.0
    %109 = vmatpush2.msra.mxu0 0.0
    %110 = vmatprep.subr.mxu0 0.0
    %111 = vmatpush2.msra.mxu0 0.0
    %112 = vmatprep.subr.mxu0 0.0
    %113 = vmatpush2.msra.mxu0 0.0
    %114 = vmatprep.subr.mxu0 0.0
    %115 = vmatpush2.msra.mxu0 0.0
    %116 = vmatprep.mubr.f32.mxu0 0.0
    %117 = vmatmul.mubr.f32.gmra.mxu0 %v35
    %v118 = vpop.f32.mrf.mxu0
    %v119 = vadd.f32 0.0, %v118
    %v120 = vpop.f32.mrf.mxu0
    %121 = vdwg.mxu0
    %v122 = vadd.f32 %v34, %v119
    %123 = vst [vmem:[#allocation5] sm:$0xff] %v122
    // Predicated region
    $region22: #{forward.1} parent=1 // pred_check
      %p124 = pneg %p29
    $region23: #{forward.1} parent=1 // pred_check_branch
      %126 = sbr.rel (%p124) target = $region25
    $region24: #{forward.1} parent=1 // pred_region
      %v127 = vld [vmem:[#allocation5] sm:$0xff]
      %v128 = vld [vmem:[%s2] sm:$0x1]
      %v130 = vlaneseq
      %v131 = vshrl.u32 %v130, 7
      %v132 = vsub.s32 0, %v131
      %v133 = vrot.slane %v128, %v132
      %v135 = vadd.f32 %v127, %v133
      %136 = vst [vmem:[#allocation5] sm:$0xff] %v135
    $region25: #{forward.1} parent=1 // pred_fallthru
      _
    // Predicated region
    $region26: #{forward.1} parent=1 // pred_check
      _
    $region27: #{forward.1} parent=1 // pred_check_branch
      %138 = sbr.rel (0) target = $region29
    $region28: #{forward.1} parent=1 // pred_region
      %s140 = ssub.s32 128, 128
      %141 = vsyncadd [#allocation4], %s140
      %s143 = sshll.u32 [#allocation5], 4
      %s144 = int_to_ptr.vmem [resolvable:$true] %s143
      %146 = dma.vmem_to_hbm [thread:$0]  %s144, 128, %s3, [#allocation4]
    $region29: #{forward.1} parent=1 // pred_fallthru
      _
    // Predicated region
    $region30: #{forward.1} parent=1 // pred_check
      _
    $region31: #{forward.1} parent=1 // pred_check_branch
      %148 = sbr.rel (0) target = $region33
    $region32: #{forward.1} parent=1 // pred_region
      %149 = dma.done [#allocation4], 128
    $region33: #{forward.1} parent=1 // pred_fallthru
      _
    %150 = vsyncpa [#allocation3], 1
    %151 = vsyncpa [#allocation4], 1

</llo_original>
